<compile_context>
chip_gen: v5e
topology: v5e:2x2
jax: 0.10.0
libtpu: 0.0.40
codegen_flags: <defaults>
</compile_context>

<pallas_src>
import math

import jax
import jax.numpy as jnp
import numpy as np
from jax import lax
from jax.experimental import pallas as pl
from jax.experimental.pallas import tpu as pltpu

_MiB = 1024 * 1024

# Older-JAX compat shim (primary path is pltpu.CompilerParams).
_CompilerParams = getattr(pltpu, "CompilerParams", None)
if _CompilerParams is None:  # pragma: no cover
    _CompilerParams = getattr(pltpu, "TPUCompilerParams")


# ----------------------------------------------------------------------------
# Helpers (mirror of the PyTorch module's parameter logic)
# ----------------------------------------------------------------------------
def check_packed_parameters_consistency(alpha, gamma, num_estimators) -> None:
    if alpha is None:
        raise ValueError("You must specify the value of the arg. `alpha`")
    if alpha <= 0:
        raise ValueError(f"Attribute `alpha` should be > 0, not {alpha}")
    if not isinstance(gamma, int):
        raise TypeError(f"Attribute `gamma` should be an int, not {type(gamma)}")
    if gamma <= 0:
        raise ValueError(f"Attribute `gamma` should be >= 1, not {gamma}")
    if num_estimators is None:
        raise ValueError("You must specify the value of the arg. `num_estimators`")
    if not isinstance(num_estimators, int):
        raise TypeError(
            f"Attribute `num_estimators` should be an int, not {type(num_estimators)}"
        )
    if num_estimators <= 0:
        raise ValueError(
            f"Attribute `num_estimators` should be >= 1, not {num_estimators}"
        )


def _triple(v):
    if isinstance(v, (tuple, list)):
        assert len(v) == 3
        return tuple(int(x) for x in v)
    return (int(v),) * 3


def _round_up(x, m):
    return ((x + m - 1) // m) * m


def _vmem_capacity_bytes():
    """Physical VMEM per TensorCore; conservative fallback if unqueryable."""
    try:
        cap = int(pltpu.get_tpu_info().vmem_capacity_bytes)
        if cap > 0:
            return cap
    except Exception:
        pass
    return 64 * _MiB  # assume v7x-like (smallest) if unknown


def _choose_p_tile(NP, KC, cout_gp, in_itemsize, out_itemsize,
                   vmem_budget, patches_bufs=2):
    """Waste-aware lane-tile selection.

    Prefers tiles >= 256 lanes (fills the 256-wide MXU N dim on v6e/v7x),
    then minimal round_up(NP, pt) padding waste, then fewer grid steps,
    subject to the multi-buffered per-step blocks fitting `vmem_budget`.
    """
    np_ceil = _round_up(max(NP, 1), 128)
    best_key, best_pt = None, 128
    pt = 128
    while pt <= min(np_ceil, 4096):
        vmem = (patches_bufs * KC * pt * in_itemsize          # patches block
                + 2 * cout_gp * KC * in_itemsize              # weight block
                + 2 * cout_gp * 4                             # bias block
                + 2 * cout_gp * pt * out_itemsize)            # output block
        if vmem > vmem_budget:
            break
        padded = _round_up(NP, pt)
        key = (0 if pt >= 256 else 1, padded, -pt)
        if best_key is None or key < best_key:
            best_key, best_pt = key, pt
        pt += 128
    return best_pt


# ----------------------------------------------------------------------------
# Pallas kernel: lane-dense grouped matmul + bias
#   one (group, P-tile) block per grid step
# ----------------------------------------------------------------------------
def _grouped_matmul_bias_kernel(p_ref, w_ref, b_ref, o_ref):
    # p_ref: (KC, Pt)  w_ref: (cout_gp, KC)  b_ref: (cout_gp, 1)  o_ref: (cout_gp, Pt)
    acc = jnp.dot(w_ref[...], p_ref[...], preferred_element_type=jnp.float32)
    o_ref[...] = (acc + b_ref[...]).astype(o_ref.dtype)


def _patches_block_spec(block_shape, index_map, buffer_count):
    """Patches stream spec, optionally 3-deep buffered (v5e/v6e headroom)."""
    if buffer_count > 2 and hasattr(pl, "Buffered"):
        try:
            return pl.BlockSpec(block_shape, index_map,
                                pipeline_mode=pl.Buffered(buffer_count))
        except TypeError:  # BlockSpec without pipeline_mode support
            pass
    return pl.BlockSpec(block_shape, index_map)


def grouped_matmul_bias(patches, weights, bias, out_dtype, p_tile,
                        patches_bufs, vmem_limit_bytes):
    """patches: (G, KC, NPp); weights: (G, cout_gp, KC); bias: (G, cout_gp, 1)."""
    G, KC, NPp = patches.shape
    cout_gp = weights.shape[1]
    n_p = NPp // p_tile

    # Megacore / 2-TC balance: put the axis that splits evenly across cores
    # first.  Weight/bias blocks are tiny, so losing their residency when the
    # P axis is outermost costs ~nothing on this HBM-bound kernel.
    if G >= 2 and G % 2 == 0:
        grid = (G, n_p)
        p_map = lambda g, p: (g, 0, p)
        w_map = lambda g, p: (g, 0, 0)
        o_map = lambda g, p: (g, 0, p)
    else:
        grid = (n_p, G)
        p_map = lambda p, g: (g, 0, p)
        w_map = lambda p, g: (g, 0, 0)
        o_map = lambda p, g: (g, 0, p)

    flops = int(2 * G * cout_gp * KC * NPp)
    bytes_accessed = int(
        patches.size * patches.dtype.itemsize
        + weights.size * weights.dtype.itemsize
        + bias.size * bias.dtype.itemsize
        + G * cout_gp * NPp * jnp.dtype(out_dtype).itemsize
    )

    return pl.pallas_call(
        _grouped_matmul_bias_kernel,
        out_shape=jax.ShapeDtypeStruct((G, cout_gp, NPp), out_dtype),
        grid_spec=pltpu.PrefetchScalarGridSpec(
            num_scalar_prefetch=0,
            grid=grid,
            in_specs=[
                _patches_block_spec((None, KC, p_tile), p_map, patches_bufs),
                pl.BlockSpec((None, cout_gp, KC), w_map),
                pl.BlockSpec((None, cout_gp, 1), w_map),
            ],
            out_specs=pl.BlockSpec((None, cout_gp, p_tile), o_map),
        ),
        compiler_params=_CompilerParams(
            dimension_semantics=("parallel", "parallel"),
            vmem_limit_bytes=vmem_limit_bytes,
        ),
        cost_estimate=pl.CostEstimate(
            flops=flops, transcendentals=0, bytes_accessed=bytes_accessed
        ),
    )(patches, weights, bias)


# ----------------------------------------------------------------------------
# Forward: NCDHW grouped conv3d via transpose-light im2col + Pallas matmul
# ----------------------------------------------------------------------------
def packed_conv3d_forward(x, weight, bias, groups, stride, padding, dilation,
                          compute_dtype=jnp.bfloat16):
    # x: (N, Cin_ext, D, H, W); weight: (Cout_ext, Cin_g, KD, KH, KW)
    N, C, D, H, W = x.shape
    Cout, cin_g, KD, KH, KW = weight.shape
    G = groups
    cout_g = Cout // G
    sd, sh, sw = stride
    pd, ph, pw = padding
    dd, dh, dw = dilation

    OD = (D + 2 * pd - dd * (KD - 1) - 1) // sd + 1
    OH = (H + 2 * ph - dh * (KH - 1) - 1) // sh + 1
    OW = (W + 2 * pw - dw * (KW - 1) - 1) // sw + 1

    K = KD * KH * KW
    P = OD * OH * OW
    KC = cin_g * K
    NP = N * P

    out_dtype = x.dtype
    cdt = jnp.dtype(compute_dtype) if compute_dtype is not None else jnp.dtype(x.dtype)

    # Cast the small input ONCE before im2col so the K x-inflated patches are
    # written directly in the compute dtype (no extra full-size cast pass).
    xp = jnp.pad(x.astype(cdt), ((0, 0), (0, 0), (pd, pd), (ph, ph), (pw, pw)))
    # One cheap transpose of the small (non-inflated) input so the patches
    # flatten to (G, KC, N*P) with pure reshapes: one lane-dense stream, no
    # per-sample ragged P tiles, G * n_p grid steps total.
    xg = xp.reshape(N, G, cin_g, D + 2 * pd, H + 2 * ph, W + 2 * pw)
    xg = jnp.transpose(xg, (1, 2, 0, 3, 4, 5))  # (G, cin_g, N, Dp, Hp, Wp)

    # im2col: one shifted strided view per kernel tap; (cin, kd, kh, kw)
    # contraction order matches the torch weight flattening.
    slabs = []
    for kd in range(KD):
        for kh in range(KH):
            for kw_ in range(KW):
                d0, h0, w0 = kd * dd, kh * dh, kw_ * dw
                slabs.append(
                    xg[:, :, :,
                       d0: d0 + sd * (OD - 1) + 1: sd,
                       h0: h0 + sh * (OH - 1) + 1: sh,
                       w0: w0 + sw * (OW - 1) + 1: sw]
                )
    patches = jnp.stack(slabs, axis=2).reshape(G, KC, NP)

    # Weight -> (G, cout_g, KC); pad cout_g to a sublane multiple so the
    # output stores are unmasked (padded rows are exact zeros, sliced off).
    cout_gp = _round_up(cout_g, 8)
    wmat = weight.reshape(G, cout_g, KC).astype(cdt)
    wmat = jnp.pad(wmat, ((0, 0), (0, cout_gp - cout_g), (0, 0)))

    if bias is None:
        bvec = jnp.zeros((G, cout_gp, 1), dtype=jnp.float32)
    else:
        bvec = jnp.pad(bias.reshape(G, cout_g, 1).astype(jnp.float32),
                       ((0, 0), (0, cout_gp - cout_g), (0, 0)))

    # Generation-aware tiling: 128-MiB-VMEM parts (v5e/v6e) get a bigger
    # budget + 3-deep patch buffering; 64-MiB parts (v7x) get a capped
    # working set and a <= 48 MiB scoped limit.
    vmem_cap = _vmem_capacity_bytes()
    big_vmem = vmem_cap >= 128 * _MiB
    patches_bufs = 3 if big_vmem else 2
    vmem_budget = 24 * _MiB if big_vmem else 20 * _MiB
    vmem_limit = 64 * _MiB if big_vmem else 48 * _MiB

    p_tile = _choose_p_tile(
        NP, KC, cout_gp,
        in_itemsize=jnp.dtype(cdt).itemsize,
        out_itemsize=jnp.dtype(out_dtype).itemsize,
        vmem_budget=vmem_budget, patches_bufs=patches_bufs)
    NP_pad = _round_up(NP, p_tile)
    if NP_pad != NP:
        # Minimal-waste lane padding (< p_tile columns total).  KC is left
        # unpadded (full-dim blocks are legal), so this is the only pad
        # touching the large tensor; padded columns are sliced off below.
        # NOTE: if KC grows very large, add an "arbitrary" KC-reduction grid
        # axis with a VMEM f32 accumulator instead of a single full-KC block.
        patches = jnp.pad(patches, ((0, 0), (0, 0), (0, NP_pad - NP)))

    out = grouped_matmul_bias(patches, wmat, bvec, out_dtype, p_tile,
                              patches_bufs, vmem_limit)

    # (G, cout_gp, NP_pad) -> valid slice -> (N, Cout, OD, OH, OW).
    out = out[:, :cout_g, :NP].reshape(G, cout_g, N, OD, OH, OW)
    out = jnp.transpose(out, (2, 0, 1, 3, 4, 5)).reshape(N, G * cout_g, OD, OH, OW)
    return out


# ----------------------------------------------------------------------------
# Module wrapper (replicates PackedConv3d.__init__ channel/group arithmetic)
# ----------------------------------------------------------------------------
class PackedConv3d:
    def __init__(
        self,
        in_channels,
        out_channels,
        kernel_size,
        alpha,
        num_estimators,
        gamma=1,
        stride=1,
        padding=0,
        dilation=1,
        groups=1,
        minimum_channels_per_group=64,
        bias=True,
        first=False,
        last=False,
        dtype=jnp.float32,
        compute_dtype=jnp.bfloat16,
        key=None,
    ):
        check_packed_parameters_consistency(alpha, gamma, num_estimators)
        self.num_estimators = num_estimators
        self.compute_dtype = compute_dtype

        extended_in_channels = int(in_channels * (1 if first else alpha))
        extended_out_channels = int(out_channels * (num_estimators if last else alpha))
        actual_groups = 1 if first else gamma * groups * num_estimators
        while (
            extended_in_channels % actual_groups != 0
            or extended_in_channels // actual_groups < minimum_channels_per_group
        ) and actual_groups // (groups * num_estimators) > 1:
            gamma -= 1
            actual_groups = gamma * groups * num_estimators
        if extended_in_channels % actual_groups:
            extended_in_channels += num_estimators - extended_in_channels % actual_groups
        if extended_out_channels % actual_groups:
            extended_out_channels += (
                num_estimators - extended_out_channels % actual_groups
            )

        self.in_channels = extended_in_channels
        self.out_channels = extended_out_channels
        self.groups = actual_groups
        self.kernel_size = _triple(kernel_size)
        self.stride = _triple(stride)
        self.padding = _triple(padding)
        self.dilation = _triple(dilation)

        cin_g = extended_in_channels // actual_groups
        kd, kh, kw = self.kernel_size
        fan_in = cin_g * kd * kh * kw
        bound = 1.0 / math.sqrt(fan_in)
        if key is None:
            key = jax.random.PRNGKey(0)
        k_w, k_b = jax.random.split(key)
        # torch Conv3d weight layout: (out_channels, in_channels // groups, KD, KH, KW)
        self.weight = jax.random.uniform(
            k_w,
            (extended_out_channels, cin_g, kd, kh, kw),
            dtype=dtype,
            minval=-bound,
            maxval=bound,
        )
        self.bias = (
            jax.random.uniform(
                k_b, (extended_out_channels,), dtype=dtype, minval=-bound, maxval=bound
            )
            if bias
            else None
        )

    def __call__(self, x):
        return packed_conv3d_forward(
            x, self.weight, self.bias, self.groups, self.stride, self.padding,
            self.dilation, compute_dtype=self.compute_dtype,
        )


# ----------------------------------------------------------------------------
# Main
# ----------------------------------------------------------------------------
if __name__ == "__main__":
    key = jax.random.PRNGKey(0)

    # PackedConv3d(4 -> 4, k=3, alpha=2, M=2) => extended 8 -> 8 channels, groups=2
    layer = PackedConv3d(
        in_channels=4,
        out_channels=4,
        kernel_size=3,
        alpha=2,
        num_estimators=2,
        gamma=1,
        stride=1,
        padding=1,
        bias=True,
        key=key,
    )

    x_key = jax.random.fold_in(key, 1)
    x = jax.random.normal(
        x_key, (2, layer.in_channels, 6, 6, 6), dtype=jnp.float32
    )  # NCDHW

    out = layer(x)
    out = jax.block_until_ready(out)

    # Pure-JAX reference (grouped conv).  The kernel streams bf16 operands with
    # f32 accumulation, so compare against the reference computed on the same
    # bf16-rounded operands (products are then exact; only accumulation order
    # differs).
    x_ref = x.astype(jnp.bfloat16).astype(jnp.float32)
    w_ref = layer.weight.astype(jnp.bfloat16).astype(jnp.float32)
    pd, ph, pw = layer.padding
    ref = lax.conv_general_dilated(
        x_ref,
        w_ref,
        window_strides=layer.stride,
        padding=[(pd, pd), (ph, ph), (pw, pw)],
        rhs_dilation=layer.dilation,
        dimension_numbers=("NCDHW", "OIDHW", "NCDHW"),
        feature_group_count=layer.groups,
    )
    if layer.bias is not None:
        ref = ref + layer.bias[None, :, None, None, None]

    np.testing.assert_allclose(
        np.asarray(out), np.asarray(ref), rtol=1e-4, atol=1e-4
    )
    print("KERNEL_OK")
</pallas_src>

<mosaic_0001>
module attributes {stable_mosaic.version = 11 : i64} {
  func.func @_grouped_matmul_bias_kernel(%arg0: i32, %arg1: i32, %arg2: memref<1x108x512xbf16, #tpu.memory_space<vmem>>, %arg3: memref<1x8x108xbf16, #tpu.memory_space<vmem>>, %arg4: memref<1x8x1xf32, #tpu.memory_space<vmem>>, %arg5: memref<1x8x512xf32, #tpu.memory_space<vmem>>) attributes {dimension_semantics = [#tpu.dimension_semantics<parallel>, #tpu.dimension_semantics<parallel>], iteration_bounds = array<i64: 2, 1>, scalar_prefetch = 0 : i64, scratch_operands = 0 : i64, tpu.core_type = #tpu.core_type<tc>, window_params = [{transform_indices = @transform_0, window_bounds = array<i64: 1, 108, 512>}, {transform_indices = @transform_1, window_bounds = array<i64: 1, 8, 108>}, {transform_indices = @transform_2, window_bounds = array<i64: 1, 8, 1>}, {transform_indices = @transform_3, window_bounds = array<i64: 1, 8, 512>}]} {
    %c0 = arith.constant 0 : index
    %c0_0 = arith.constant 0 : index
    %c0_1 = arith.constant 0 : index
    %0 = vector.load %arg3[%c0, %c0_0, %c0_1] : memref<1x8x108xbf16, #tpu.memory_space<vmem>>, vector<1x8x108xbf16>
    %1 = vector.shape_cast %0 : vector<1x8x108xbf16> to vector<8x108xbf16>
    %c0_2 = arith.constant 0 : index
    %c0_3 = arith.constant 0 : index
    %c0_4 = arith.constant 0 : index
    %2 = vector.load %arg2[%c0_2, %c0_3, %c0_4] : memref<1x108x512xbf16, #tpu.memory_space<vmem>>, vector<1x108x512xbf16>
    %3 = vector.shape_cast %2 : vector<1x108x512xbf16> to vector<108x512xbf16>
    %cst = arith.constant dense<0.000000e+00> : vector<8x512xf32>
    %4 = tpu.matmul %1, %3, %cst {dimension_numbers = #tpu.dot_dimension_numbers<[1], [0], [0], [1], [0, 0, 1, 1], [], []>} : vector<8x108xbf16>, vector<108x512xbf16>, vector<8x512xf32> -> vector<8x512xf32>
    %c0_5 = arith.constant 0 : index
    %c0_6 = arith.constant 0 : index
    %c0_7 = arith.constant 0 : index
    %5 = vector.load %arg4[%c0_5, %c0_6, %c0_7] : memref<1x8x1xf32, #tpu.memory_space<vmem>>, vector<1x8x1xf32>
    %6 = vector.shape_cast %5 : vector<1x8x1xf32> to vector<8x1xf32>
    %7 = vector.broadcast %6 : vector<8x1xf32> to vector<8x512xf32>
    %8 = arith.addf %4, %7 : vector<8x512xf32>
    %c0_8 = arith.constant 0 : index
    %c0_9 = arith.constant 0 : index
    %c0_10 = arith.constant 0 : index
    %9 = vector.load %arg5[%c0_8, %c0_9, %c0_10] : memref<1x8x512xf32, #tpu.memory_space<vmem>>, vector<1x8x512xf32>
    %10 = vector.shape_cast %9 : vector<1x8x512xf32> to vector<8x512xf32>
    %11 = vector.shape_cast %8 : vector<8x512xf32> to vector<1x8x512xf32>
    tpu.vector_store %arg5[%c0_8, %c0_9, %c0_10], %11 {strides = array<i32>} : memref<1x8x512xf32, #tpu.memory_space<vmem>>, vector<1x8x512xf32>,
    return
  }
  func.func @transform_0(%arg0: i32, %arg1: i32) -> (i32, i32, i32) {
    %c0_i32 = arith.constant 0 : i32
    %c0_i32_0 = arith.constant 0 : i32
    return %arg0, %c0_i32, %arg1 : i32, i32, i32
  }
  func.func @transform_1(%arg0: i32, %arg1: i32) -> (i32, i32, i32) {
    %c0_i32 = arith.constant 0 : i32
    %c0_i32_0 = arith.constant 0 : i32
    %c0_i32_1 = arith.constant 0 : i32
    return %arg0, %c0_i32, %c0_i32_0 : i32, i32, i32
  }
  func.func @transform_2(%arg0: i32, %arg1: i32) -> (i32, i32, i32) {
    %c0_i32 = arith.constant 0 : i32
    %c0_i32_0 = arith.constant 0 : i32
    %c0_i32_1 = arith.constant 0 : i32
    return %arg0, %c0_i32, %c0_i32_0 : i32, i32, i32
  }
  func.func @transform_3(%arg0: i32, %arg1: i32) -> (i32, i32, i32) {
    %c0_i32 = arith.constant 0 : i32
    %c0_i32_0 = arith.constant 0 : i32
    return %arg0, %c0_i32, %arg1 : i32, i32, i32
  }
}

</mosaic_0001>

<llo_original>
// kernel: tpu_custom_call.1
$region0: #{tpu_custom_call.1}
  #allocation0 [shape = 'u32[]', space=smem, size = 0x4, offset = 0x4, fixed_abs, tag = 'smem constant byte address 0x4 - core index']
  #allocation1 [shape = 'u32[72,128]{1,0:T(1,128)}', space=vmem, size = 0x9000, scoped, tag = 'internal scratch']
  %s0 = inlined_call_operand.vmem [shape: bf16[2,108,512], index: 0, kind: input, shape index: {}]
  %s1 = inlined_call_operand.vmem [shape: bf16[2,8,108], index: 1, kind: input, shape index: {}]
  %s2 = inlined_call_operand.vmem [shape: f32[2,8,1], index: 2, kind: input, shape index: {}]
  %s3 = inlined_call_operand.hbm [shape: f32[2,8,512], index: 3, kind: output, shape index: {}]
  %s4 = sld [smem:[#allocation0]]
  $region45: #{tpu_custom_call.1} parent=0
    _
  %s6 = ssub.s32 1, %s4
  %s7 = scalar_select 0, %s6, %s4
  $region1: #{tpu_custom_call.1} parent=0
    #allocation2 [shape = 'u8[32768]{0}', space=vmem, size = 0x8000, scoped, tag = 'output window, operand 0']
    #allocation3 [shape = 's32[2]{0}', space=sflag, size = 0x8, scoped, tag = 'scoped memory for tpu_custom_call.1']
    %8 = vsyncpa [#allocation3], 0
    %s9 = scalar_lea.sflag [#allocation3], 1
    %10 = vsyncpa %s9, 0
    loop: start=0, step=1, limit=4
    $region2: #{tpu_custom_call.1} parent=1 // loop_pre_header
      _
    $region3: #{tpu_custom_call.1} parent=1 // loop_header
      %s12 = sphi 0, %s16
      %p13 = scmp.ge.s32.totalorder %s12, 4
      %s19 = sphi 0, %s31
      %s20 = sphi 0, %s27
      %s21 = sphi 0, %s19
      %s22 = sphi 0, %s20
      %s23 = sphi 0, %s21
      %s24 = sphi 0, %s22
      %s36 = sphi 0, %s38
      %s39 = sphi 0, %s36
      %s40 = sphi 0, %s39
      %s56 = sphi 0, %s40
      %s62 = sphi 0, %s64
      %s65 = sphi 0, %s62
      %s66 = sphi 0, %s65
      %s82 = sphi 0, %s66
      %s88 = sphi 0, %s90
      %s91 = sphi 0, %s88
      %s92 = sphi 0, %s91
      %s108 = sphi 0, %s92
      %s116 = sphi 0, %s118
      %s119 = sphi 0, %s116
      %s120 = sphi 0, %s119
      %s136 = sphi 0, %s120
    $region4: #{tpu_custom_call.1} parent=1 // loop_header_branch
      %15 = sbr.rel (%p13) target = $region8
    $region5: #{tpu_custom_call.1} parent=1 // loop_body
      %s17 = ssub.s32 %s12, 1
      %s18 = ssub.s32 %s12, 2
      %s25 = sadd.s32 1, %s20
      %p26 = scmp.ge.s32.totalorder %s25, 1
      %s27 = scalar_select %p26, 0, %s25
      %s28 = sadd.s32 1, %s19
      %s29 = scalar_select %p26, %s28, %s19
      %p30 = scmp.ge.s32.totalorder %s29, 2
      %s31 = scalar_select %p30, 0, %s29
      %s32 = ssub.s32 %s19, %s31
      %s33 = ssub.s32 %s20, %s27
      %s34 = sor.u32 %s32, %s33
      %p35 = scmp.eq.s32.totalorder %s34, 0
      %s37 = sadd.s32 %s36, 1
      %s38 = scalar_select %p35, %s36, %s37
      %p41 = pneg %p35
      %p42 = scmp.eq.s32.totalorder %s12, 1
      %p43 = por %p41, %p42
      %p44 = scmp.ne.s32.totalorder %s36, %s39
      %p45 = scmp.eq.s32.totalorder %s12, 0
      %p46 = por %p44, %p45
      %p47 = scmp.ne.s32.totalorder %s36, %s39
      %p48 = scmp.eq.s32.totalorder %s17, 1
      %p49 = por %p47, %p48
      %p50 = scmp.ne.s32.totalorder %s39, %s40
      %p51 = scmp.eq.s32.totalorder %s17, 0
      %p52 = por %p50, %p51
      %p53 = scmp.ne.s32.totalorder %s39, %s40
      %p54 = scmp.eq.s32.totalorder %s18, 1
      %p55 = por %p53, %p54
      %p57 = scmp.ne.s32.totalorder %s40, %s56
      %p58 = scmp.eq.s32.totalorder %s18, 0
      %p59 = por %p57, %p58
      %s60 = ssub.s32 %s19, %s31
      %p61 = scmp.eq.s32.totalorder %s60, 0
      %s63 = sadd.s32 %s62, 1
      %s64 = scalar_select %p61, %s62, %s63
      %p67 = pneg %p61
      %p68 = scmp.eq.s32.totalorder %s12, 1
      %p69 = por %p67, %p68
      %p70 = scmp.ne.s32.totalorder %s62, %s65
      %p71 = scmp.eq.s32.totalorder %s12, 0
      %p72 = por %p70, %p71
      %p73 = scmp.ne.s32.totalorder %s62, %s65
      %p74 = scmp.eq.s32.totalorder %s17, 1
      %p75 = por %p73, %p74
      %p76 = scmp.ne.s32.totalorder %s65, %s66
      %p77 = scmp.eq.s32.totalorder %s17, 0
      %p78 = por %p76, %p77
      %p79 = scmp.ne.s32.totalorder %s65, %s66
      %p80 = scmp.eq.s32.totalorder %s18, 1
      %p81 = por %p79, %p80
      %p83 = scmp.ne.s32.totalorder %s66, %s82
      %p84 = scmp.eq.s32.totalorder %s18, 0
      %p85 = por %p83, %p84
      %s86 = ssub.s32 %s19, %s31
      %p87 = scmp.eq.s32.totalorder %s86, 0
      %s89 = sadd.s32 %s88, 1
      %s90 = scalar_select %p87, %s88, %s89
      %p93 = pneg %p87
      %p94 = scmp.eq.s32.totalorder %s12, 1
      %p95 = por %p93, %p94
      %p96 = scmp.ne.s32.totalorder %s88, %s91
      %p97 = scmp.eq.s32.totalorder %s12, 0
      %p98 = por %p96, %p97
      %p99 = scmp.ne.s32.totalorder %s88, %s91
      %p100 = scmp.eq.s32.totalorder %s17, 1
      %p101 = por %p99, %p100
      %p102 = scmp.ne.s32.totalorder %s91, %s92
      %p103 = scmp.eq.s32.totalorder %s17, 0
      %p104 = por %p102, %p103
      %p105 = scmp.ne.s32.totalorder %s91, %s92
      %p106 = scmp.eq.s32.totalorder %s18, 1
      %p107 = por %p105, %p106
      %p109 = scmp.ne.s32.totalorder %s92, %s108
      %p110 = scmp.eq.s32.totalorder %s18, 0
      %p111 = por %p109, %p110
      %s112 = ssub.s32 %s19, %s31
      %s113 = ssub.s32 %s20, %s27
      %s114 = sor.u32 %s112, %s113
      %p115 = scmp.eq.s32.totalorder %s114, 0
      %s117 = sadd.s32 %s116, 1
      %s118 = scalar_select %p115, %s116, %s117
      %p121 = pneg %p115
      %p122 = scmp.eq.s32.totalorder %s12, 1
      %p123 = por %p121, %p122
      %p124 = scmp.ne.s32.totalorder %s116, %s119
      %p125 = scmp.eq.s32.totalorder %s12, 0
      %p126 = por %p124, %p125
      %p127 = scmp.ne.s32.totalorder %s116, %s119
      %p128 = scmp.eq.s32.totalorder %s17, 1
      %p129 = por %p127, %p128
      %p130 = scmp.ne.s32.totalorder %s119, %s120
      %p131 = scmp.eq.s32.totalorder %s17, 0
      %p132 = por %p130, %p131
      %p133 = scmp.ne.s32.totalorder %s119, %s120
      %p134 = scmp.eq.s32.totalorder %s18, 1
      %p135 = por %p133, %p134
      %p137 = scmp.ne.s32.totalorder %s120, %s136
      %p138 = scmp.eq.s32.totalorder %s18, 0
      %p139 = por %p137, %p138
      %p140 = scmp.le.s32.totalorder 1, %s12
      %p141 = scmp.lt.s32.totalorder %s12, 3
      %p142 = pnand %p140, %p141
      %p143 = pneg %p142
      // Predicated region
      $region9: #{tpu_custom_call.1} parent=5 // pred_check
        _
      $region10: #{tpu_custom_call.1} parent=5 // pred_check_branch
        %145 = sbr.rel (%p142) target = $region12
      $region11: #{tpu_custom_call.1} parent=5 // pred_region
        %s146 = ssub.s32 %s12, 1
      $region12: #{tpu_custom_call.1} parent=5 // pred_fallthru
        _
      %p147 = scmp.lt.s32.totalorder %s12, 2
      // Predicated region
      $region13: #{tpu_custom_call.1} parent=5 // pred_check
        %p148 = pneg %p147
      $region14: #{tpu_custom_call.1} parent=5 // pred_check_branch
        %150 = sbr.rel (%p148) target = $region16
      $region15: #{tpu_custom_call.1} parent=5 // pred_region
        // Predicated region
        $region17: #{tpu_custom_call.1} parent=15 // pred_check
          %p151 = pneg %p46
        $region18: #{tpu_custom_call.1} parent=15 // pred_check_branch
          %153 = sbr.rel (%p151) target = $region20
        $region19: #{tpu_custom_call.1} parent=15 // pred_region
          %s154 = smul.u32 4, %s20
          %p155 = scmp.lt.s32.totalorder %s19, 1
          %s156 = scalar_select %p155, %s19, 1
          %p157 = scmp.lt.s32.totalorder %s154, 3
          %s158 = scalar_select %p157, %s154, 3
          %s159 = smul.addr %s156, 56
          %s160 = sadd.s32 %s158, %s159
          %s161 = smul.addr %s160, 4
          %s162 = scalar_lea.vmem %s0, %s161
          %s163 = smul.u32 4, %s20
        $region20: #{tpu_custom_call.1} parent=15 // pred_fallthru
          _
        // Predicated region
        $region21: #{tpu_custom_call.1} parent=15 // pred_check
          %p164 = pneg %p72
        $region22: #{tpu_custom_call.1} parent=15 // pred_check_branch
          %166 = sbr.rel (%p164) target = $region24
        $region23: #{tpu_custom_call.1} parent=15 // pred_region
          %p167 = scmp.lt.s32.totalorder %s19, 1
          %s168 = scalar_select %p167, %s19, 1
          %s169 = smul.addr %s168, 4
          %s170 = scalar_lea.vmem %s1, %s169
        $region24: #{tpu_custom_call.1} parent=15 // pred_fallthru
          _
        // Predicated region
        $region25: #{tpu_custom_call.1} parent=15 // pred_check
          %p171 = pneg %p98
        $region26: #{tpu_custom_call.1} parent=15 // pred_check_branch
          %173 = sbr.rel (%p171) target = $region28
        $region27: #{tpu_custom_call.1} parent=15 // pred_region
          %p174 = scmp.lt.s32.totalorder %s19, 1
          %s175 = scalar_select %p174, %s19, 1
          %s176 = smul.addr %s175, 8
          %s177 = scalar_lea.vmem %s2, %s176
        $region28: #{tpu_custom_call.1} parent=15 // pred_fallthru
          _
      $region16: #{tpu_custom_call.1} parent=5 // pred_fallthru
        _
      %p178 = scmp.le.s32.totalorder 1, %s12
      %p179 = scmp.lt.s32.totalorder %s12, 3
      %p180 = pnand %p178, %p179
      %p181 = pneg %p180
      // Predicated region
      $region29: #{tpu_custom_call.1} parent=5 // pred_check
        _
      $region30: #{tpu_custom_call.1} parent=5 // pred_check_branch
        %183 = sbr.rel (%p180) target = $region32
      $region31: #{tpu_custom_call.1} parent=5 // pred_region
        %s184 = ssub.s32 %s12, 1
        %s185 = smul.u32 4, %s22
        %p186 = scmp.lt.s32.totalorder %s21, 1
        %s187 = scalar_select %p186, %s21, 1
        %p188 = scmp.lt.s32.totalorder %s185, 3
        %s189 = scalar_select %p188, %s185, 3
        %s190 = smul.addr %s187, 56
        %s191 = sadd.s32 %s189, %s190
        %s192 = smul.addr %s191, 4
        %s193 = scalar_lea.vmem %s0, %s192
        %p194 = pneg %p52
        %p195 = pneg %p49
        %p196 = scmp.lt.s32.totalorder %s21, 1
        %s197 = scalar_select %p196, %s21, 1
        %s198 = smul.addr %s197, 4
        %s199 = scalar_lea.vmem %s1, %s198
        %p200 = pneg %p78
        %p201 = pneg %p75
        %p202 = scmp.lt.s32.totalorder %s21, 1
        %s203 = scalar_select %p202, %s21, 1
        %s204 = smul.addr %s203, 8
        %s205 = scalar_lea.vmem %s2, %s204
        %p206 = pneg %p104
        %p207 = pneg %p101
        %p208 = pneg %p132
        %p209 = pneg %p129
        %s210 = sand.u32 %s119, 1
        %s211 = scalar_lea.sflag [#allocation3], %s210
        %s212 = sand.u32 %s119, 1
        %s213 = smul.addr %s212, 32
        %s214 = scalar_lea.vmem [#allocation2], %s213
        %s215 = smul.u32 4, %s22
        %p216 = scmp.lt.s32.totalorder %s21, 1
        %s217 = scalar_select %p216, %s21, 1
        %p218 = scmp.lt.s32.totalorder %s215, 3
        %s219 = scalar_select %p218, %s215, 3
        %s220 = smul.addr %s217, 56
        %s221 = sadd.s32 %s219, %s220
        %s222 = smul.addr %s221, 4
        %s223 = scalar_lea.vmem %s0, %s222
        %s224 = smul.u32 4, %s22
        %p225 = scmp.lt.s32.totalorder %s21, 1
        %s226 = scalar_select %p225, %s21, 1
        %s227 = smul.addr %s226, 4
        %s228 = scalar_lea.vmem %s1, %s227
        %p229 = scmp.lt.s32.totalorder %s21, 1
        %s230 = scalar_select %p229, %s21, 1
        %s231 = smul.addr %s230, 8
        %s232 = scalar_lea.vmem %s2, %s231
        %s233 = smul.u32 4, %s22
        %v235 = vld [vmem:[%s228] sm:$0xf]
        %v236 = vld [vmem:[%s223] sm:$0xff]
        %v237 = vld [vmem:[%s223 + $0x8] sm:$0xff]
        %v238 = vld [vmem:[%s223 + $0x10] sm:$0xff]
        %v239 = vld [vmem:[%s223 + $0x18] sm:$0xff]
        %v240 = vld [vmem:[%s223 + $0x20] sm:$0xff]
        %v241 = vld [vmem:[%s223 + $0x28] sm:$0xff]
        %v242 = vld [vmem:[%s223 + $0x30] sm:$0xff]
        %v243 = vld [vmem:[%s223 + $0x38] sm:$0xff]
        %v244 = vld [vmem:[%s223 + $0x40] sm:$0xff]
        %v245 = vld [vmem:[%s223 + $0x48] sm:$0xff]
        %v246 = vld [vmem:[%s223 + $0x50] sm:$0xff]
        %v247 = vld [vmem:[%s223 + $0x58] sm:$0xff]
        %v248 = vld [vmem:[%s223 + $0x60] sm:$0xff]
        %v249 = vld [vmem:[%s223 + $0x68] sm:$0xff]
        %v250 = vld [vmem:[%s223 + $0x70] sm:$0xff]
        %v251 = vld [vmem:[%s223 + $0x78] sm:$0xff]
        %v252 = vld [vmem:[%s223 + $0x80] sm:$0xff]
        %v253 = vld [vmem:[%s223 + $0x88] sm:$0xff]
        %v254 = vld [vmem:[%s223 + $0x90] sm:$0xff]
        %v255 = vld [vmem:[%s223 + $0x98] sm:$0xff]
        %v256 = vld [vmem:[%s223 + $0xa0] sm:$0xff]
        %v257 = vld [vmem:[%s223 + $0xa8] sm:$0xff]
        %v258 = vld [vmem:[%s223 + $0xb0] sm:$0xff]
        %v259 = vld [vmem:[%s223 + $0xb8] sm:$0xff]
        %v260 = vld [vmem:[%s223 + $0xc0] sm:$0xff]
        %v261 = vld [vmem:[%s223 + $0xc8] sm:$0xff]
        %v262 = vld [vmem:[%s223 + $0xd0] sm:$0x33]
        %v263 = vld [vmem:[%s223 + $0xd8] sm:$0x33]
        %v264 = vld [vmem:[%s232] sm:$0xff]
        %266 = vset.pattern.permute.xlu0 0
        %267 = vperm.xlu0 %266, %v264
        %v268 = vpop.permute.xlu0 %267
        %v298 = vunpack.c.l.b16 %v236
        %v299 = vunpack.c.h.b16 %v236
        %v300 = vunpack.c.l.b16 %v237
        %v301 = vunpack.c.h.b16 %v237
        %v302 = vunpack.c.l.b16 %v238
        %v303 = vunpack.c.h.b16 %v238
        %v304 = vunpack.c.l.b16 %v239
        %v305 = vunpack.c.h.b16 %v239
        %v306 = vunpack.c.l.b16 %v240
        %v307 = vunpack.c.h.b16 %v240
        %v308 = vunpack.c.l.b16 %v241
        %v309 = vunpack.c.h.b16 %v241
        %v310 = vunpack.c.l.b16 %v242
        %v311 = vunpack.c.h.b16 %v242
        %v312 = vunpack.c.l.b16 %v243
        %v313 = vunpack.c.h.b16 %v243
        %v314 = vunpack.c.l.b16 %v244
        %v315 = vunpack.c.h.b16 %v244
        %v316 = vunpack.c.l.b16 %v245
        %v317 = vunpack.c.h.b16 %v245
        %v318 = vunpack.c.l.b16 %v246
        %v319 = vunpack.c.h.b16 %v246
        %v320 = vunpack.c.l.b16 %v247
        %v321 = vunpack.c.h.b16 %v247
        %v322 = vunpack.c.l.b16 %v248
        %v323 = vunpack.c.h.b16 %v248
        %v324 = vunpack.c.l.b16 %v249
        %v325 = vunpack.c.h.b16 %v249
        %v326 = vunpack.c.l.b16 %v250
        %v327 = vunpack.c.h.b16 %v250
        %v328 = vunpack.c.l.b16 %v251
        %v329 = vunpack.c.h.b16 %v251
        %v330 = vunpack.c.l.b16 %v252
        %v331 = vunpack.c.h.b16 %v252
        %v332 = vunpack.c.l.b16 %v253
        %v333 = vunpack.c.h.b16 %v253
        %v334 = vunpack.c.l.b16 %v254
        %v335 = vunpack.c.h.b16 %v254
        %v336 = vunpack.c.l.b16 %v255
        %v337 = vunpack.c.h.b16 %v255
        %v338 = vunpack.c.l.b16 %v256
        %v339 = vunpack.c.h.b16 %v256
        %v340 = vunpack.c.l.b16 %v257
        %v341 = vunpack.c.h.b16 %v257
        %v342 = vunpack.c.l.b16 %v258
        %v343 = vunpack.c.h.b16 %v258
        %v344 = vunpack.c.l.b16 %v259
        %v345 = vunpack.c.h.b16 %v259
        %v346 = vunpack.c.l.b16 %v260
        %v347 = vunpack.c.h.b16 %v260
        %v348 = vunpack.c.l.b16 %v261
        %v349 = vunpack.c.h.b16 %v261
        %v350 = vunpack.c.l.b16 %v262
        %v351 = vunpack.c.h.b16 %v262
        %v352 = vunpack.c.l.b16 %v263
        %v353 = vunpack.c.h.b16 %v263
        %v354 = vpack.c.b16 %v302, %v298
        %v355 = vpack.c.b16 %v303, %v299
        %v356 = vpack.c.b16 %v304, %v300
        %v357 = vpack.c.b16 %v305, %v301
        %v358 = vpack.c.b16 %v310, %v306
        %v359 = vpack.c.b16 %v311, %v307
        %v360 = vpack.c.b16 %v312, %v308
        %v361 = vpack.c.b16 %v313, %v309
        %v362 = vpack.c.b16 %v318, %v314
        %v363 = vpack.c.b16 %v319, %v315
        %v364 = vpack.c.b16 %v320, %v316
        %v365 = vpack.c.b16 %v321, %v317
        %v366 = vpack.c.b16 %v326, %v322
        %v367 = vpack.c.b16 %v327, %v323
        %v368 = vpack.c.b16 %v328, %v324
        %v369 = vpack.c.b16 %v329, %v325
        %v370 = vpack.c.b16 %v334, %v330
        %v371 = vpack.c.b16 %v335, %v331
        %v372 = vpack.c.b16 %v336, %v332
        %v373 = vpack.c.b16 %v337, %v333
        %v374 = vpack.c.b16 %v342, %v338
        %v375 = vpack.c.b16 %v343, %v339
        %v376 = vpack.c.b16 %v344, %v340
        %v377 = vpack.c.b16 %v345, %v341
        %v378 = vpack.c.b16 %v350, %v346
        %v379 = vpack.c.b16 %v351, %v347
        %v380 = vpack.c.b16 %v352, %v348
        %v381 = vpack.c.b16 %v353, %v349
        %vm406 = vcmask 883712
        %v408 = vsel %vm406, %v235, 0
        %vm410 = vcmask 1045504
        %v412 = vsel %vm410, %v378, 0
        %v415 = vsel %vm410, %v379, 0
        %v418 = vsel %vm410, %v380, 0
        %v421 = vsel %vm410, %v381, 0
        %423 = vmatpush.bf16.msra.mxu0 0
        %424 = vmatpush.bf16.msra.mxu0 %v412
        %425 = vmatpush.bf16.msra.mxu0 %v374
        %426 = vmatpush.bf16.msra.mxu0 %v370
        %427 = vmatpush.bf16.msra.mxu0 %v366
        %428 = vmatpush.bf16.msra.mxu0 %v362
        %429 = vmatpush.bf16.msra.mxu0 %v358
        %430 = vmatpush.bf16.msra.mxu0 %v354
        %431 = vmatmul.bf16.gmra.mxu0 %v408
        %v432 = vpop.f32.mrf.mxu0
        %v433 = vadd.f32 %v268, %v432
        %v434 = vpop.f32.mrf.mxu0
        %435 = vdwg.mxu0
        %436 = vmatpush.bf16.msra.mxu0 0
        %437 = vmatpush.bf16.msra.mxu0 %v415
        %438 = vmatpush.bf16.msra.mxu0 %v375
        %439 = vmatpush.bf16.msra.mxu0 %v371
        %440 = vmatpush.bf16.msra.mxu0 %v367
        %441 = vmatpush.bf16.msra.mxu0 %v363
        %442 = vmatpush.bf16.msra.mxu0 %v359
        %443 = vmatpush.bf16.msra.mxu0 %v355
        %444 = vmatmul.bf16.gmra.mxu0 %v408
        %v445 = vpop.f32.mrf.mxu0
        %v446 = vadd.f32 %v268, %v445
        %v447 = vpop.f32.mrf.mxu0
        %448 = vdwg.mxu0
        %449 = vmatpush.bf16.msra.mxu0 0
        %450 = vmatpush.bf16.msra.mxu0 %v418
        %451 = vmatpush.bf16.msra.mxu0 %v376
        %452 = vmatpush.bf16.msra.mxu0 %v372
        %453 = vmatpush.bf16.msra.mxu0 %v368
        %454 = vmatpush.bf16.msra.mxu0 %v364
        %455 = vmatpush.bf16.msra.mxu0 %v360
        %456 = vmatpush.bf16.msra.mxu0 %v356
        %457 = vmatmul.bf16.gmra.mxu0 %v408
        %v458 = vpop.f32.mrf.mxu0
        %v459 = vadd.f32 %v268, %v458
        %v460 = vpop.f32.mrf.mxu0
        %461 = vdwg.mxu0
        %462 = vmatpush.bf16.msra.mxu0 0
        %463 = vmatpush.bf16.msra.mxu0 %v421
        %464 = vmatpush.bf16.msra.mxu0 %v377
        %465 = vmatpush.bf16.msra.mxu0 %v373
        %466 = vmatpush.bf16.msra.mxu0 %v369
        %467 = vmatpush.bf16.msra.mxu0 %v365
        %468 = vmatpush.bf16.msra.mxu0 %v361
        %469 = vmatpush.bf16.msra.mxu0 %v357
        %470 = vmatmul.bf16.gmra.mxu0 %v408
        %v471 = vpop.f32.mrf.mxu0
        %v472 = vadd.f32 %v268, %v471
        %v473 = vpop.f32.mrf.mxu0
        %474 = vdwg.mxu0
        %475 = vst [vmem:[%s214] sm:$0xff] %v433
        %476 = vst [vmem:[%s214 + $0x8] sm:$0xff] %v446
        %477 = vst [vmem:[%s214 + $0x10] sm:$0xff] %v459
        %478 = vst [vmem:[%s214 + $0x18] sm:$0xff] %v472
        %s479 = sand.u32 %s119, 1
        %s480 = scalar_lea.sflag [#allocation3], %s479
        %s481 = sand.u32 %s119, 1
        %s482 = smul.addr %s481, 32
        %s483 = scalar_lea.vmem [#allocation2], %s482
        // Predicated region
        $region33: #{tpu_custom_call.1} parent=31 // pred_check
          %p484 = pneg %p129
        $region34: #{tpu_custom_call.1} parent=31 // pred_check_branch
          %486 = sbr.rel (%p484) target = $region36
        $region35: #{tpu_custom_call.1} parent=31 // pred_region
          %s487 = smul.u32 4, %s22
          %489 = vsyncadd %s480, 0
          %s490 = smul.addr %s21, 4
          %s491 = sadd.s32 %s487, %s490
          %s492 = smul.addr %s491, 8
          %s493 = scalar_lea.hbm %s3, %s492
          %s495 = sshll.u32 %s483, 4
          %s496 = int_to_ptr.vmem [resolvable:$true] %s495
          %s497 = sshll.u32 %s493, 4
          %s498 = int_to_ptr.hbm [resolvable:$true] %s497
          %500 = dma.vmem_to_hbm [thread:$0]  %s496, 512, %s498, %s480
        $region36: #{tpu_custom_call.1} parent=31 // pred_fallthru
          _
      $region32: #{tpu_custom_call.1} parent=5 // pred_fallthru
        _
      %p501 = scmp.le.s32.totalorder 2, %s12
      // Predicated region
      $region37: #{tpu_custom_call.1} parent=5 // pred_check
        %p502 = pneg %p501
      $region38: #{tpu_custom_call.1} parent=5 // pred_check_branch
        %504 = sbr.rel (%p502) target = $region40
      $region39: #{tpu_custom_call.1} parent=5 // pred_region
        %s505 = ssub.s32 %s12, 2
        // Predicated region
        $region41: #{tpu_custom_call.1} parent=39 // pred_check
          %p506 = pneg %p135
        $region42: #{tpu_custom_call.1} parent=39 // pred_check_branch
          %508 = sbr.rel (%p506) target = $region44
        $region43: #{tpu_custom_call.1} parent=39 // pred_region
          %s509 = sand.u32 %s120, 1
          %s510 = scalar_lea.sflag [#allocation3], %s509
          %s511 = sand.u32 %s120, 1
          %s512 = smul.addr %s511, 32
          %s513 = scalar_lea.vmem [#allocation2], %s512
          %515 = dma.done %s510, 512
        $region44: #{tpu_custom_call.1} parent=39 // pred_fallthru
          _
      $region40: #{tpu_custom_call.1} parent=5 // pred_fallthru
        _
    $region6: #{tpu_custom_call.1} parent=1 // loop_footer
      %s16 = sadd.s32 1, %s12
    $region7: #{tpu_custom_call.1} parent=1 // loop_footer_branch
      %11 = sbr.rel target = $region3
    $region8: #{tpu_custom_call.1} parent=1 // loop_exit
      _
    %516 = vsyncpa [#allocation3], 1
    %s517 = scalar_lea.sflag [#allocation3], 1
    %518 = vsyncpa %s517, 1

</llo_original>
